<compile_context>
chip_gen: v7x
topology: tpu7x:2x2x1
jax: 0.10.0
libtpu: 0.0.40
codegen_flags: <defaults>
</compile_context>

<pallas_src>
import jax
import jax.numpy as jnp
from jax.experimental import pallas as pl
from jax.experimental.pallas import tpu as pltpu

LANE = 128          # lane width / MXU-friendly padded width for the action head
SUB_ROWS = 256      # max rows per in-kernel compute chunk (vreg-pressure cap)


def _make_kernel(sub, n_sub):
    """Build the fused MLP kernel for a batch tile of n_sub * sub rows."""

    def kernel(x_ref, w1_ref, b1_ref, w2_ref, b2_ref, w3_ref, b3_ref, o_ref):
        # Weights/biases are resident in VMEM across all grid steps.
        w1 = w1_ref[...]          # (S, H)   bf16
        b1 = b1_ref[...]          # (1, H)   f32
        w2 = w2_ref[...]          # (H, H)   bf16
        b2 = b2_ref[...]          # (1, H)   f32
        w3 = w3_ref[...]          # (H, 128) bf16 (lane-padded for the MXU)
        b3 = b3_ref[...]          # (1, A_out) f32
        a_out = o_ref.shape[-1]

        def chunk(r):
            # In-kernel bf16 cast of the f32 input tile (no wrapper-side cast).
            x = x_ref[pl.ds(r, sub), :].astype(jnp.bfloat16)                  # (sub, S)
            h1 = jnp.dot(x, w1, preferred_element_type=jnp.float32) + b1
            h1 = jnp.maximum(h1, 0.0).astype(jnp.bfloat16)                    # (sub, H)
            h2 = jnp.dot(h1, w2, preferred_element_type=jnp.float32) + b2
            h2 = jnp.maximum(h2, 0.0).astype(jnp.bfloat16)                    # (sub, H)
            q = jnp.dot(h2, w3, preferred_element_type=jnp.float32)           # (sub, 128)
            # Keep only the (padded-to-8) action lanes for a small writeback.
            o_ref[pl.ds(r, sub), :] = (q[:, :a_out] + b3).astype(o_ref.dtype)

        if n_sub == 1:
            chunk(0)
        else:
            def body(i, carry):
                chunk(pl.multiple_of(i * sub, sub))
                return carry
            jax.lax.fori_loop(0, n_sub, body, 0, unroll=True)

    return kernel


def _pick_batch_tile(B):
    """Single grid step for small/medium B; big tiles (even step count) for large B."""
    if B <= 512:
        return B
    # Prefer an even number of large steps so v7x can shard across both TCs.
    for t in (2048, 1024, 512):
        if B % t == 0 and (B // t) % 2 == 0:
            return t
    for t in (2048, 1024, 512, 256):
        if B % t == 0:
            return t
    return B


def prepare_params(params):
    """One-time parameter prep: bf16 weights, f32 biases, action head padded.

    Call once and reuse the result across forward calls (removes ~6 small XLA
    ops from every forward pass)."""
    A = params["w3"].shape[1]
    A_mxu = max(LANE, pl.cdiv(A, LANE) * LANE)       # matmul width (MXU-friendly)
    A_out = max(8, ((A + 7) // 8) * 8)               # stored output width (small writeback)
    return {
        "w1": params["w1"].astype(jnp.bfloat16),
        "b1": params["b1"].reshape(1, -1).astype(jnp.float32),
        "w2": params["w2"].astype(jnp.bfloat16),
        "b2": params["b2"].reshape(1, -1).astype(jnp.float32),
        "w3": jnp.pad(params["w3"], ((0, 0), (0, A_mxu - A))).astype(jnp.bfloat16),
        "b3": jnp.pad(params["b3"].reshape(1, -1),
                      ((0, 0), (0, A_out - A))).astype(jnp.float32),
    }


def qnetwork_forward(x, prepped, action_size, *, batch_tile=None):
    """x: (B, state_size) float32. prepped: output of prepare_params()."""
    B, S = x.shape
    H = prepped["w1"].shape[1]
    A_mxu = prepped["w3"].shape[1]
    A_out = prepped["b3"].shape[1]

    tm = _pick_batch_tile(B) if batch_tile is None else batch_tile
    assert B % tm == 0, "batch must be divisible by batch_tile"
    assert tm == B or tm % 8 == 0, "batch_tile must be a multiple of 8 or equal to B"

    # Sub-block rows inside the kernel so (sub, H) f32 intermediates fit in vregs.
    sub = SUB_ROWS if (tm > SUB_ROWS and tm % SUB_ROWS == 0) else tm
    kernel = _make_kernel(sub, tm // sub)

    grid = (B // tm,)
    batch_map = lambda i: (i, 0)     # streams x / out tiles over the batch
    const_map = lambda i: (0, 0)     # weights/biases resident across all grid steps

    out = pl.pallas_call(
        kernel,
        out_shape=jax.ShapeDtypeStruct((B, A_out), jnp.float32),
        grid_spec=pltpu.PrefetchScalarGridSpec(
            num_scalar_prefetch=0,
            grid=grid,
            in_specs=[
                pl.BlockSpec((tm, S), batch_map),        # x tile (f32, cast in-kernel)
                pl.BlockSpec((S, H), const_map),         # w1
                pl.BlockSpec((1, H), const_map),         # b1
                pl.BlockSpec((H, H), const_map),         # w2
                pl.BlockSpec((1, H), const_map),         # b2
                pl.BlockSpec((H, A_mxu), const_map),     # w3 (128-lane for the MXU)
                pl.BlockSpec((1, A_out), const_map),     # b3 (narrow, matches output)
            ],
            out_specs=pl.BlockSpec((tm, A_out), batch_map),
        ),
        compiler_params=pltpu.CompilerParams(
            dimension_semantics=("parallel",),
        ),
    )(x, prepped["w1"], prepped["b1"], prepped["w2"], prepped["b2"],
      prepped["w3"], prepped["b3"])

    # Drop the (tiny) action padding, if any.
    return out if A_out == action_size else out[:, :action_size]


def init_params(key, state_size, action_size, hidden=128):
    """Deterministic init mimicking PyTorch Linear (uniform +-1/sqrt(fan_in))."""
    ks = jax.random.split(key, 6)

    def linear(kw, kb, fan_in, fan_out):
        bound = 1.0 / jnp.sqrt(fan_in)
        w = jax.random.uniform(kw, (fan_in, fan_out), jnp.float32, -bound, bound)
        b = jax.random.uniform(kb, (1, fan_out), jnp.float32, -bound, bound)
        return w, b

    w1, b1 = linear(ks[0], ks[1], state_size, hidden)
    w2, b2 = linear(ks[2], ks[3], hidden, hidden)
    w3, b3 = linear(ks[4], ks[5], hidden, action_size)
    return {"w1": w1, "b1": b1, "w2": w2, "b2": b2, "w3": w3, "b3": b3}


def qnetwork_ref_bf16(x, p):
    """Pure-JAX reference matching the kernel's bf16-input / f32-accumulate path."""
    xb = x.astype(jnp.bfloat16)
    w1 = p["w1"].astype(jnp.bfloat16)
    w2 = p["w2"].astype(jnp.bfloat16)
    w3 = p["w3"].astype(jnp.bfloat16)
    h1 = jnp.maximum(jnp.dot(xb, w1, preferred_element_type=jnp.float32) + p["b1"], 0.0)
    h1 = h1.astype(jnp.bfloat16)
    h2 = jnp.maximum(jnp.dot(h1, w2, preferred_element_type=jnp.float32) + p["b2"], 0.0)
    h2 = h2.astype(jnp.bfloat16)
    return jnp.dot(h2, w3, preferred_element_type=jnp.float32) + p["b3"]


def qnetwork_ref_f32(x, p):
    h1 = jnp.maximum(x @ p["w1"] + p["b1"], 0.0)
    h2 = jnp.maximum(h1 @ p["w2"] + p["b2"], 0.0)
    return h2 @ p["w3"] + p["b3"]


if __name__ == "__main__":
    key = jax.random.PRNGKey(0)
    k_params, k_x = jax.random.split(key)

    batch = 64
    state_size = 32
    action_size = 4

    params = init_params(k_params, state_size, action_size)
    prepped = prepare_params(params)                 # one-time bf16 / padding prep
    x = jax.random.normal(k_x, (batch, state_size), dtype=jnp.float32)

    # Default tiling: B=64 <= 512 -> a single grid step (no pointless 0.35us bubbles).
    out = qnetwork_forward(x, prepped, action_size)
    out = jax.block_until_ready(out)

    assert out.shape == (batch, action_size)

    # Compare against a pure-JAX reference that matches the kernel's bf16 path.
    ref_bf16 = qnetwork_ref_bf16(x, params)
    assert jnp.allclose(out, ref_bf16, atol=2e-3, rtol=2e-3), \
        "mismatch vs bf16-matched JAX reference"

    # Looser sanity check against the full-f32 reference (bf16 rounding only).
    # TODO(synk): bf16 matmuls are an intentional precision relaxation vs the f32
    # PyTorch module; tighten to f32 inputs if DDQN argmax stability requires it.
    ref_f32 = qnetwork_ref_f32(x, params)
    assert jnp.max(jnp.abs(out - ref_f32)) < 5e-2, "mismatch vs f32 reference"

    print("KERNEL_OK")
</pallas_src>

<mosaic_0001>
module attributes {stable_mosaic.version = 11 : i64} {
  func.func @kernel(%arg0: i32, %arg1: memref<64x32xf32, #tpu.memory_space<vmem>>, %arg2: memref<32x128xbf16, #tpu.memory_space<vmem>>, %arg3: memref<1x128xf32, #tpu.memory_space<vmem>>, %arg4: memref<128x128xbf16, #tpu.memory_space<vmem>>, %arg5: memref<1x128xf32, #tpu.memory_space<vmem>>, %arg6: memref<128x128xbf16, #tpu.memory_space<vmem>>, %arg7: memref<1x8xf32, #tpu.memory_space<vmem>>, %arg8: memref<64x8xf32, #tpu.memory_space<vmem>>) attributes {dimension_semantics = [#tpu.dimension_semantics<parallel>], iteration_bounds = array<i64: 1>, scalar_prefetch = 0 : i64, scratch_operands = 0 : i64, tpu.core_type = #tpu.core_type<tc>, window_params = [{transform_indices = @transform_0, window_bounds = array<i64: 64, 32>}, {pipeline_mode = #tpu.pipeline_mode<synchronous>, transform_indices = @transform_1, window_bounds = array<i64: 32, 128>}, {pipeline_mode = #tpu.pipeline_mode<synchronous>, transform_indices = @transform_2, window_bounds = array<i64: 1, 128>}, {pipeline_mode = #tpu.pipeline_mode<synchronous>, transform_indices = @transform_3, window_bounds = array<i64: 128, 128>}, {pipeline_mode = #tpu.pipeline_mode<synchronous>, transform_indices = @transform_4, window_bounds = array<i64: 1, 128>}, {pipeline_mode = #tpu.pipeline_mode<synchronous>, transform_indices = @transform_5, window_bounds = array<i64: 128, 128>}, {pipeline_mode = #tpu.pipeline_mode<synchronous>, transform_indices = @transform_6, window_bounds = array<i64: 1, 8>}, {transform_indices = @transform_7, window_bounds = array<i64: 64, 8>}]} {
    %c0 = arith.constant 0 : index
    %c0_0 = arith.constant 0 : index
    %0 = vector.load %arg2[%c0, %c0_0] : memref<32x128xbf16, #tpu.memory_space<vmem>>, vector<32x128xbf16>
    %c0_1 = arith.constant 0 : index
    %c0_2 = arith.constant 0 : index
    %1 = vector.load %arg3[%c0_1, %c0_2] : memref<1x128xf32, #tpu.memory_space<vmem>>, vector<1x128xf32>
    %c0_3 = arith.constant 0 : index
    %c0_4 = arith.constant 0 : index
    %2 = vector.load %arg4[%c0_3, %c0_4] : memref<128x128xbf16, #tpu.memory_space<vmem>>, vector<128x128xbf16>
    %c0_5 = arith.constant 0 : index
    %c0_6 = arith.constant 0 : index
    %3 = vector.load %arg5[%c0_5, %c0_6] : memref<1x128xf32, #tpu.memory_space<vmem>>, vector<1x128xf32>
    %c0_7 = arith.constant 0 : index
    %c0_8 = arith.constant 0 : index
    %4 = vector.load %arg6[%c0_7, %c0_8] : memref<128x128xbf16, #tpu.memory_space<vmem>>, vector<128x128xbf16>
    %c0_9 = arith.constant 0 : index
    %c0_10 = arith.constant 0 : index
    %5 = vector.load %arg7[%c0_9, %c0_10] : memref<1x8xf32, #tpu.memory_space<vmem>>, vector<1x8xf32>
    %c0_11 = arith.constant 0 : index
    %c0_12 = arith.constant 0 : index
    %6 = vector.load %arg1[%c0_11, %c0_12] : memref<64x32xf32, #tpu.memory_space<vmem>>, vector<64x32xf32>
    %7 = arith.truncf %6 : vector<64x32xf32> to vector<64x32xbf16>
    %cst = arith.constant dense<0.000000e+00> : vector<64x128xf32>
    %8 = tpu.matmul %7, %0, %cst {dimension_numbers = #tpu.dot_dimension_numbers<[1], [0], [0], [1], [0, 0, 1, 1], [], []>} : vector<64x32xbf16>, vector<32x128xbf16>, vector<64x128xf32> -> vector<64x128xf32>
    %9 = vector.broadcast %1 : vector<1x128xf32> to vector<64x128xf32>
    %10 = arith.addf %8, %9 : vector<64x128xf32>
    %cst_13 = arith.constant 0.000000e+00 : f32
    %11 = vector.broadcast %cst_13 : f32 to vector<64x128xf32>
    %12 = arith.maximumf %10, %11 : vector<64x128xf32>
    %13 = arith.truncf %12 : vector<64x128xf32> to vector<64x128xbf16>
    %cst_14 = arith.constant dense<0.000000e+00> : vector<64x128xf32>
    %14 = tpu.matmul %13, %2, %cst_14 {dimension_numbers = #tpu.dot_dimension_numbers<[1], [0], [0], [1], [0, 0, 1, 1], [], []>} : vector<64x128xbf16>, vector<128x128xbf16>, vector<64x128xf32> -> vector<64x128xf32>
    %15 = vector.broadcast %3 : vector<1x128xf32> to vector<64x128xf32>
    %16 = arith.addf %14, %15 : vector<64x128xf32>
    %cst_15 = arith.constant 0.000000e+00 : f32
    %17 = vector.broadcast %cst_15 : f32 to vector<64x128xf32>
    %18 = arith.maximumf %16, %17 : vector<64x128xf32>
    %19 = arith.truncf %18 : vector<64x128xf32> to vector<64x128xbf16>
    %cst_16 = arith.constant dense<0.000000e+00> : vector<64x128xf32>
    %20 = tpu.matmul %19, %4, %cst_16 {dimension_numbers = #tpu.dot_dimension_numbers<[1], [0], [0], [1], [0, 0, 1, 1], [], []>} : vector<64x128xbf16>, vector<128x128xbf16>, vector<64x128xf32> -> vector<64x128xf32>
    %21 = vector.extract_strided_slice %20 {offsets = [0, 0], sizes = [64, 8], strides = [1, 1]} : vector<64x128xf32> to vector<64x8xf32>
    %22 = vector.broadcast %5 : vector<1x8xf32> to vector<64x8xf32>
    %23 = arith.addf %21, %22 : vector<64x8xf32>
    %c0_17 = arith.constant 0 : index
    %c0_18 = arith.constant 0 : index
    %24 = vector.load %arg8[%c0_17, %c0_18] : memref<64x8xf32, #tpu.memory_space<vmem>>, vector<64x8xf32>
    tpu.vector_store %arg8[%c0_17, %c0_18], %23 {strides = array<i32>} : memref<64x8xf32, #tpu.memory_space<vmem>>, vector<64x8xf32>,
    return
  }
  func.func @transform_0(%arg0: i32) -> (i32, i32) {
    %c0_i32 = arith.constant 0 : i32
    %c0_i32_0 = arith.constant 0 : i32
    return %arg0, %c0_i32 : i32, i32
  }
  func.func @transform_1(%arg0: i32) -> (i32, i32) {
    %c0_i32 = arith.constant 0 : i32
    %c0_i32_0 = arith.constant 0 : i32
    %c0_i32_1 = arith.constant 0 : i32
    return %c0_i32, %c0_i32_0 : i32, i32
  }
  func.func @transform_2(%arg0: i32) -> (i32, i32) {
    %c0_i32 = arith.constant 0 : i32
    %c0_i32_0 = arith.constant 0 : i32
    %c0_i32_1 = arith.constant 0 : i32
    return %c0_i32, %c0_i32_0 : i32, i32
  }
  func.func @transform_3(%arg0: i32) -> (i32, i32) {
    %c0_i32 = arith.constant 0 : i32
    %c0_i32_0 = arith.constant 0 : i32
    %c0_i32_1 = arith.constant 0 : i32
    return %c0_i32, %c0_i32_0 : i32, i32
  }
  func.func @transform_4(%arg0: i32) -> (i32, i32) {
    %c0_i32 = arith.constant 0 : i32
    %c0_i32_0 = arith.constant 0 : i32
    %c0_i32_1 = arith.constant 0 : i32
    return %c0_i32, %c0_i32_0 : i32, i32
  }
  func.func @transform_5(%arg0: i32) -> (i32, i32) {
    %c0_i32 = arith.constant 0 : i32
    %c0_i32_0 = arith.constant 0 : i32
    %c0_i32_1 = arith.constant 0 : i32
    return %c0_i32, %c0_i32_0 : i32, i32
  }
  func.func @transform_6(%arg0: i32) -> (i32, i32) {
    %c0_i32 = arith.constant 0 : i32
    %c0_i32_0 = arith.constant 0 : i32
    %c0_i32_1 = arith.constant 0 : i32
    return %c0_i32, %c0_i32_0 : i32, i32
  }
  func.func @transform_7(%arg0: i32) -> (i32, i32) {
    %c0_i32 = arith.constant 0 : i32
    %c0_i32_0 = arith.constant 0 : i32
    return %arg0, %c0_i32 : i32, i32
  }
}

</mosaic_0001>

<llo_original>
// kernel: tpu_custom_call.1
$region0: #{tpu_custom_call.1}
  #allocation0 [shape = 'u32[]', space=smem, size = 0x4, offset = 0x4, fixed_abs, tag = 'smem constant byte address 0x4 - core index']
  #allocation1 [shape = 'u32[144,128]{1,0:T(1,128)}', space=vmem, size = 0x12000, scoped, tag = 'internal scratch']
  %s0 = inlined_call_operand.vmem [shape: f32[64,32], index: 0, kind: input, shape index: {}]
  %s1 = inlined_call_operand.vmem [shape: bf16[32,128], index: 1, kind: input, shape index: {}]
  %s2 = inlined_call_operand.vmem [shape: f32[1,128], index: 2, kind: input, shape index: {}]
  %s3 = inlined_call_operand.vmem [shape: bf16[128,128], index: 3, kind: input, shape index: {}]
  %s4 = inlined_call_operand.vmem [shape: f32[1,128], index: 4, kind: input, shape index: {}]
  %s5 = inlined_call_operand.hbm [shape: bf16[128,128], index: 5, kind: input, shape index: {}]
  %s6 = inlined_call_operand.vmem [shape: f32[1,8], index: 6, kind: input, shape index: {}]
  %s7 = inlined_call_operand.vmem [shape: f32[64,8], index: 7, kind: output, shape index: {}]
  %s8 = sld [smem:[#allocation0]]
  $region42: #{tpu_custom_call.1} parent=0
    _
  %s10 = ssub.s32 1, %s8
  %s11 = scalar_select 0, %s10, %s8
  $region1: #{tpu_custom_call.1} parent=0
    #allocation2 [shape = 'u8[32768]{0}', space=vmem, size = 0x8000, scoped, tag = 'input window, operand 5, single buffered']
    #allocation3 [shape = 's32[1]{0}', space=sflag, size = 0x4, scoped, tag = 'scoped memory for tpu_custom_call.1']
    %12 = vsyncpa [#allocation3], 0
    // Predicated region
    $region2: #{tpu_custom_call.1} parent=1 // pred_check
      _
    $region3: #{tpu_custom_call.1} parent=1 // pred_check_branch
      %14 = sbr.rel (0) target = $region5
    $region4: #{tpu_custom_call.1} parent=1 // pred_region
      _
    $region5: #{tpu_custom_call.1} parent=1 // pred_fallthru
      _
    // Predicated region
    $region6: #{tpu_custom_call.1} parent=1 // pred_check
      _
    $region7: #{tpu_custom_call.1} parent=1 // pred_check_branch
      %16 = sbr.rel (0) target = $region9
    $region8: #{tpu_custom_call.1} parent=1 // pred_region
      _
    $region9: #{tpu_custom_call.1} parent=1 // pred_fallthru
      _
    // Predicated region
    $region10: #{tpu_custom_call.1} parent=1 // pred_check
      _
    $region11: #{tpu_custom_call.1} parent=1 // pred_check_branch
      %18 = sbr.rel (0) target = $region13
    $region12: #{tpu_custom_call.1} parent=1 // pred_region
      _
    $region13: #{tpu_custom_call.1} parent=1 // pred_fallthru
      _
    // Predicated region
    $region14: #{tpu_custom_call.1} parent=1 // pred_check
      _
    $region15: #{tpu_custom_call.1} parent=1 // pred_check_branch
      %20 = sbr.rel (0) target = $region17
    $region16: #{tpu_custom_call.1} parent=1 // pred_region
      _
    $region17: #{tpu_custom_call.1} parent=1 // pred_fallthru
      _
    // Predicated region
    $region18: #{tpu_custom_call.1} parent=1 // pred_check
      _
    $region19: #{tpu_custom_call.1} parent=1 // pred_check_branch
      %22 = sbr.rel (0) target = $region21
    $region20: #{tpu_custom_call.1} parent=1 // pred_region
      _
    $region21: #{tpu_custom_call.1} parent=1 // pred_fallthru
      _
    // Predicated region
    $region22: #{tpu_custom_call.1} parent=1 // pred_check
      _
    $region23: #{tpu_custom_call.1} parent=1 // pred_check_branch
      %24 = sbr.rel (0) target = $region25
    $region24: #{tpu_custom_call.1} parent=1 // pred_region
      %s26 = ssub.s32 1024, 1024
      %27 = vsyncadd [#allocation3], %s26
      %s28 = sshll.u32 [#allocation2], 4
      %s29 = int_to_ptr.vmem [resolvable:$true] %s28
      %34 = dma.hbm_to_vmem [thread:$0]  %s5, 1024, %s29, [#allocation3], 64, 64, 4
    $region25: #{tpu_custom_call.1} parent=1 // pred_fallthru
      _
    // Predicated region
    $region26: #{tpu_custom_call.1} parent=1 // pred_check
      _
    $region27: #{tpu_custom_call.1} parent=1 // pred_check_branch
      %36 = sbr.rel (0) target = $region29
    $region28: #{tpu_custom_call.1} parent=1 // pred_region
      _
    $region29: #{tpu_custom_call.1} parent=1 // pred_fallthru
      _
    // Predicated region
    $region30: #{tpu_custom_call.1} parent=1 // pred_check
      _
    $region31: #{tpu_custom_call.1} parent=1 // pred_check_branch
      %38 = sbr.rel (0) target = $region33
    $region32: #{tpu_custom_call.1} parent=1 // pred_region
      %39 = dma.done [#allocation3], 1024
    $region33: #{tpu_custom_call.1} parent=1 // pred_fallthru
      _
    %v41 = vld [vmem:[%s1] sm:$0xf]
    %v42 = vld [vmem:[%s1 + $0x4] sm:$0xf]
    %v43 = vld [vmem:[%s1 + $0x8] sm:$0xf]
    %v44 = vld [vmem:[%s1 + $0xc] sm:$0xf]
    %v45 = vld [vmem:[%s2] sm:$0x1]
    %v46 = vld [vmem:[%s3] sm:$0xf]
    %v47 = vld [vmem:[%s3 + $0x4] sm:$0xf]
    %v48 = vld [vmem:[%s3 + $0x8] sm:$0xf]
    %v49 = vld [vmem:[%s3 + $0xc] sm:$0xf]
    %v50 = vld [vmem:[%s3 + $0x10] sm:$0xf]
    %v51 = vld [vmem:[%s3 + $0x14] sm:$0xf]
    %v52 = vld [vmem:[%s3 + $0x18] sm:$0xf]
    %v53 = vld [vmem:[%s3 + $0x1c] sm:$0xf]
    %v54 = vld [vmem:[%s3 + $0x20] sm:$0xf]
    %v55 = vld [vmem:[%s3 + $0x24] sm:$0xf]
    %v56 = vld [vmem:[%s3 + $0x28] sm:$0xf]
    %v57 = vld [vmem:[%s3 + $0x2c] sm:$0xf]
    %v58 = vld [vmem:[%s3 + $0x30] sm:$0xf]
    %v59 = vld [vmem:[%s3 + $0x34] sm:$0xf]
    %v60 = vld [vmem:[%s3 + $0x38] sm:$0xf]
    %v61 = vld [vmem:[%s3 + $0x3c] sm:$0xf]
    %v62 = vld [vmem:[%s4] sm:$0x1]
    %v63 = vld [vmem:[#allocation2] sm:$0xf]
    %v64 = vld [vmem:[#allocation2 + $0x4] sm:$0xf]
    %v65 = vld [vmem:[#allocation2 + $0x8] sm:$0xf]
    %v66 = vld [vmem:[#allocation2 + $0xc] sm:$0xf]
    %v67 = vld [vmem:[#allocation2 + $0x10] sm:$0xf]
    %v68 = vld [vmem:[#allocation2 + $0x14] sm:$0xf]
    %v69 = vld [vmem:[#allocation2 + $0x18] sm:$0xf]
    %v70 = vld [vmem:[#allocation2 + $0x1c] sm:$0xf]
    %v71 = vld [vmem:[#allocation2 + $0x20] sm:$0xf]
    %v72 = vld [vmem:[#allocation2 + $0x24] sm:$0xf]
    %v73 = vld [vmem:[#allocation2 + $0x28] sm:$0xf]
    %v74 = vld [vmem:[#allocation2 + $0x2c] sm:$0xf]
    %v75 = vld [vmem:[#allocation2 + $0x30] sm:$0xf]
    %v76 = vld [vmem:[#allocation2 + $0x34] sm:$0xf]
    %v77 = vld [vmem:[#allocation2 + $0x38] sm:$0xf]
    %v78 = vld [vmem:[#allocation2 + $0x3c] sm:$0xf]
    %v79 = vld [vmem:[%s6] sm:$0x1]
    %v80 = vld [vmem:[%s0] sm:$0xff]
    %v81 = vld [vmem:[%s0 + $0x8] sm:$0xff]
    %v82 = vld [vmem:[%s0 + $0x10] sm:$0xff]
    %v83 = vld [vmem:[%s0 + $0x18] sm:$0xff]
    %v84 = vld [vmem:[%s0 + $0x20] sm:$0xff]
    %v85 = vld [vmem:[%s0 + $0x28] sm:$0xff]
    %v86 = vld [vmem:[%s0 + $0x30] sm:$0xff]
    %v87 = vld [vmem:[%s0 + $0x38] sm:$0xff]
    %v88 = vpack.c.bf16 %v81, %v80
    %v89 = vpack.c.bf16 %v83, %v82
    %v90 = vpack.c.bf16 %v85, %v84
    %v91 = vpack.c.bf16 %v87, %v86
    %v93 = vlaneseq
    %v94 = vshrl.u32 %v93, 7
    %v95 = vsub.s32 0, %v94
    %v96 = vrot.slane %v45, %v95
    %v102 = vunpack.c.l.b16 %v41
    %v103 = vunpack.c.l.b16 %v42
    %v104 = vunpack.c.l.b16 %v43
    %v105 = vunpack.c.l.b16 %v44
    %v106 = vpack.c.b16 %v103, %v102
    %v107 = vpack.c.b16 %v105, %v104
    %vm110 = vcmask 261120
    %v112 = vsel %vm110, %v88, 0
    %v115 = vsel %vm110, %v89, 0
    %v118 = vsel %vm110, %v90, 0
    %v121 = vsel %vm110, %v91, 0
    %123 = vmatprep.subr.bf16.mxu0 0
    %124 = vmatpush1.bf16.msra.mxu0 %v106
    %125 = vmatprep.subr.bf16.mxu0 0
    %126 = vmatpush1.bf16.msra.mxu0 %v107
    %127 = vmatprep.subr.bf16.mxu0 0
    %128 = vmatpush1.bf16.msra.mxu0 0
    %129 = vmatprep.subr.bf16.mxu0 0
    %130 = vmatpush1.bf16.msra.mxu0 0
    %131 = vmatprep.subr.bf16.mxu0 0
    %132 = vmatpush1.bf16.msra.mxu0 0
    %133 = vmatprep.subr.bf16.mxu0 0
    %134 = vmatpush1.bf16.msra.mxu0 0
    %135 = vmatprep.subr.bf16.mxu0 0
    %136 = vmatpush1.bf16.msra.mxu0 0
    %137 = vmatprep.subr.bf16.mxu0 0
    %138 = vmatpush1.bf16.msra.mxu0 0
    %139 = vmatprep.subr.bf16.mxu0 0
    %140 = vmatpush1.bf16.msra.mxu0 0
    %141 = vmatprep.subr.bf16.mxu0 0
    %142 = vmatpush1.bf16.msra.mxu0 0
    %143 = vmatprep.subr.bf16.mxu0 0
    %144 = vmatpush1.bf16.msra.mxu0 0
    %145 = vmatprep.subr.bf16.mxu0 0
    %146 = vmatpush1.bf16.msra.mxu0 0
    %147 = vmatprep.subr.bf16.mxu0 0
    %148 = vmatpush1.bf16.msra.mxu0 0
    %149 = vmatprep.subr.bf16.mxu0 0
    %150 = vmatpush1.bf16.msra.mxu0 0
    %151 = vmatprep.subr.bf16.mxu0 0
    %152 = vmatpush1.bf16.msra.mxu0 0
    %153 = vmatprep.subr.bf16.mxu0 0
    %154 = vmatpush1.bf16.msra.mxu0 0
    %155 = vmatprep.mubr.bf16.mxu0 0
    %156 = vmatmul.mubr.bf16.gmra.mrb[0].mxu0 %v112
    %v157 = vpop.f32.mrb[0].mxu0
    %v158 = vadd.f32 %v96, %v157
    %v159 = vpop.f32.mrb[0].mxu0
    %v160 = vpop.f32.mrb[0].mxu0
    %v161 = vadd.f32 %v96, %v160
    %v162 = vpop.f32.mrb[0].mxu0
    %163 = vmatprep.mubr.bf16.mxu0 0
    %164 = vmatmul.mubr.bf16.gmra.mrb[0].mxu0 %v115
    %v165 = vpop.f32.mrb[0].mxu0
    %v166 = vadd.f32 %v96, %v165
    %v167 = vpop.f32.mrb[0].mxu0
    %v168 = vpop.f32.mrb[0].mxu0
    %v169 = vadd.f32 %v96, %v168
    %v170 = vpop.f32.mrb[0].mxu0
    %171 = vmatprep.mubr.bf16.mxu0 0
    %172 = vmatmul.mubr.bf16.gmra.mrb[0].mxu0 %v118
    %v173 = vpop.f32.mrb[0].mxu0
    %v174 = vadd.f32 %v96, %v173
    %v175 = vpop.f32.mrb[0].mxu0
    %v176 = vpop.f32.mrb[0].mxu0
    %v177 = vadd.f32 %v96, %v176
    %v178 = vpop.f32.mrb[0].mxu0
    %179 = vmatprep.mubr.bf16.mxu0 0
    %180 = vmatmul.mubr.bf16.gmra.mrb[0].mxu0 %v121
    %v181 = vpop.f32.mrb[0].mxu0
    %v182 = vadd.f32 %v96, %v181
    %v183 = vpop.f32.mrb[0].mxu0
    %v184 = vpop.f32.mrb[0].mxu0
    %v185 = vadd.f32 %v96, %v184
    %v186 = vpop.f32.mrb[0].mxu0
    %187 = vdwg.mxu0
    %v188 = vmax.f32 %v158, 0.0
    %v189 = vmax.f32 %v161, 0.0
    %v190 = vmax.f32 %v166, 0.0
    %v191 = vmax.f32 %v169, 0.0
    %v192 = vmax.f32 %v174, 0.0
    %v193 = vmax.f32 %v177, 0.0
    %v194 = vmax.f32 %v182, 0.0
    %v195 = vmax.f32 %v185, 0.0
    %v196 = vpack.c.bf16 %v189, %v188
    %v197 = vpack.c.bf16 %v191, %v190
    %v198 = vpack.c.bf16 %v193, %v192
    %v199 = vpack.c.bf16 %v195, %v194
    %v201 = vlaneseq
    %v202 = vshrl.u32 %v201, 7
    %v203 = vsub.s32 0, %v202
    %v204 = vrot.slane %v62, %v203
    %v222 = vunpack.c.l.b16 %v46
    %v223 = vunpack.c.l.b16 %v47
    %v224 = vunpack.c.l.b16 %v48
    %v225 = vunpack.c.l.b16 %v49
    %v226 = vunpack.c.l.b16 %v50
    %v227 = vunpack.c.l.b16 %v51
    %v228 = vunpack.c.l.b16 %v52
    %v229 = vunpack.c.l.b16 %v53
    %v230 = vunpack.c.l.b16 %v54
    %v231 = vunpack.c.l.b16 %v55
    %v232 = vunpack.c.l.b16 %v56
    %v233 = vunpack.c.l.b16 %v57
    %v234 = vunpack.c.l.b16 %v58
    %v235 = vunpack.c.l.b16 %v59
    %v236 = vunpack.c.l.b16 %v60
    %v237 = vunpack.c.l.b16 %v61
    %v238 = vpack.c.b16 %v223, %v222
    %v239 = vpack.c.b16 %v225, %v224
    %v240 = vpack.c.b16 %v227, %v226
    %v241 = vpack.c.b16 %v229, %v228
    %v242 = vpack.c.b16 %v231, %v230
    %v243 = vpack.c.b16 %v233, %v232
    %v244 = vpack.c.b16 %v235, %v234
    %v245 = vpack.c.b16 %v237, %v236
    %254 = vmatprep.subr.bf16.mxu0 0
    %255 = vmatpush1.bf16.msra.mxu0 %v238
    %256 = vmatprep.subr.bf16.mxu0 0
    %257 = vmatpush1.bf16.msra.mxu0 %v239
    %258 = vmatprep.subr.bf16.mxu0 0
    %259 = vmatpush1.bf16.msra.mxu0 %v240
    %260 = vmatprep.subr.bf16.mxu0 0
    %261 = vmatpush1.bf16.msra.mxu0 %v241
    %262 = vmatprep.subr.bf16.mxu0 0
    %263 = vmatpush1.bf16.msra.mxu0 %v242
    %264 = vmatprep.subr.bf16.mxu0 0
    %265 = vmatpush1.bf16.msra.mxu0 %v243
    %266 = vmatprep.subr.bf16.mxu0 0
    %267 = vmatpush1.bf16.msra.mxu0 %v244
    %268 = vmatprep.subr.bf16.mxu0 0
    %269 = vmatpush1.bf16.msra.mxu0 %v245
    %270 = vmatprep.subr.bf16.mxu0 0
    %271 = vmatpush1.bf16.msra.mxu0 0
    %272 = vmatprep.subr.bf16.mxu0 0
    %273 = vmatpush1.bf16.msra.mxu0 0
    %274 = vmatprep.subr.bf16.mxu0 0
    %275 = vmatpush1.bf16.msra.mxu0 0
    %276 = vmatprep.subr.bf16.mxu0 0
    %277 = vmatpush1.bf16.msra.mxu0 0
    %278 = vmatprep.subr.bf16.mxu0 0
    %279 = vmatpush1.bf16.msra.mxu0 0
    %280 = vmatprep.subr.bf16.mxu0 0
    %281 = vmatpush1.bf16.msra.mxu0 0
    %282 = vmatprep.subr.bf16.mxu0 0
    %283 = vmatpush1.bf16.msra.mxu0 0
    %284 = vmatprep.subr.bf16.mxu0 0
    %285 = vmatpush1.bf16.msra.mxu0 0
    %286 = vmatprep.mubr.bf16.mxu0 0
    %287 = vmatmul.mubr.bf16.gmra.mrb[0].mxu0 %v196
    %v288 = vpop.f32.mrb[0].mxu0
    %v289 = vadd.f32 %v204, %v288
    %v290 = vpop.f32.mrb[0].mxu0
    %v291 = vpop.f32.mrb[0].mxu0
    %v292 = vadd.f32 %v204, %v291
    %v293 = vpop.f32.mrb[0].mxu0
    %294 = vmatprep.mubr.bf16.mxu0 0
    %295 = vmatmul.mubr.bf16.gmra.mrb[0].mxu0 %v197
    %v296 = vpop.f32.mrb[0].mxu0
    %v297 = vadd.f32 %v204, %v296
    %v298 = vpop.f32.mrb[0].mxu0
    %v299 = vpop.f32.mrb[0].mxu0
    %v300 = vadd.f32 %v204, %v299
    %v301 = vpop.f32.mrb[0].mxu0
    %302 = vmatprep.mubr.bf16.mxu0 0
    %303 = vmatmul.mubr.bf16.gmra.mrb[0].mxu0 %v198
    %v304 = vpop.f32.mrb[0].mxu0
    %v305 = vadd.f32 %v204, %v304
    %v306 = vpop.f32.mrb[0].mxu0
    %v307 = vpop.f32.mrb[0].mxu0
    %v308 = vadd.f32 %v204, %v307
    %v309 = vpop.f32.mrb[0].mxu0
    %310 = vmatprep.mubr.bf16.mxu0 0
    %311 = vmatmul.mubr.bf16.gmra.mrb[0].mxu0 %v199
    %v312 = vpop.f32.mrb[0].mxu0
    %v313 = vadd.f32 %v204, %v312
    %v314 = vpop.f32.mrb[0].mxu0
    %v315 = vpop.f32.mrb[0].mxu0
    %v316 = vadd.f32 %v204, %v315
    %v317 = vpop.f32.mrb[0].mxu0
    %318 = vdwg.mxu0
    %v319 = vmax.f32 %v289, 0.0
    %v320 = vmax.f32 %v292, 0.0
    %v321 = vmax.f32 %v297, 0.0
    %v322 = vmax.f32 %v300, 0.0
    %v323 = vmax.f32 %v305, 0.0
    %v324 = vmax.f32 %v308, 0.0
    %v325 = vmax.f32 %v313, 0.0
    %v326 = vmax.f32 %v316, 0.0
    %v327 = vpack.c.bf16 %v320, %v319
    %v328 = vpack.c.bf16 %v322, %v321
    %v329 = vpack.c.bf16 %v324, %v323
    %v330 = vpack.c.bf16 %v326, %v325
    %v347 = vunpack.c.l.b16 %v63
    %v348 = vunpack.c.l.b16 %v64
    %v349 = vunpack.c.l.b16 %v65
    %v350 = vunpack.c.l.b16 %v66
    %v351 = vunpack.c.l.b16 %v67
    %v352 = vunpack.c.l.b16 %v68
    %v353 = vunpack.c.l.b16 %v69
    %v354 = vunpack.c.l.b16 %v70
    %v355 = vunpack.c.l.b16 %v71
    %v356 = vunpack.c.l.b16 %v72
    %v357 = vunpack.c.l.b16 %v73
    %v358 = vunpack.c.l.b16 %v74
    %v359 = vunpack.c.l.b16 %v75
    %v360 = vunpack.c.l.b16 %v76
    %v361 = vunpack.c.l.b16 %v77
    %v362 = vunpack.c.l.b16 %v78
    %v363 = vpack.c.b16 %v348, %v347
    %v364 = vpack.c.b16 %v350, %v349
    %v365 = vpack.c.b16 %v352, %v351
    %v366 = vpack.c.b16 %v354, %v353
    %v367 = vpack.c.b16 %v356, %v355
    %v368 = vpack.c.b16 %v358, %v357
    %v369 = vpack.c.b16 %v360, %v359
    %v370 = vpack.c.b16 %v362, %v361
    %379 = vmatprep.subr.bf16.mxu0 0
    %380 = vmatpush1.bf16.msra.mxu0 %v363
    %381 = vmatprep.subr.bf16.mxu0 0
    %382 = vmatpush1.bf16.msra.mxu0 %v364
    %383 = vmatprep.subr.bf16.mxu0 0
    %384 = vmatpush1.bf16.msra.mxu0 %v365
    %385 = vmatprep.subr.bf16.mxu0 0
    %386 = vmatpush1.bf16.msra.mxu0 %v366
    %387 = vmatprep.subr.bf16.mxu0 0
    %388 = vmatpush1.bf16.msra.mxu0 %v367
    %389 = vmatprep.subr.bf16.mxu0 0
    %390 = vmatpush1.bf16.msra.mxu0 %v368
    %391 = vmatprep.subr.bf16.mxu0 0
    %392 = vmatpush1.bf16.msra.mxu0 %v369
    %393 = vmatprep.subr.bf16.mxu0 0
    %394 = vmatpush1.bf16.msra.mxu0 %v370
    %395 = vmatprep.subr.bf16.mxu0 0
    %396 = vmatpush1.bf16.msra.mxu0 0
    %397 = vmatprep.subr.bf16.mxu0 0
    %398 = vmatpush1.bf16.msra.mxu0 0
    %399 = vmatprep.subr.bf16.mxu0 0
    %400 = vmatpush1.bf16.msra.mxu0 0
    %401 = vmatprep.subr.bf16.mxu0 0
    %402 = vmatpush1.bf16.msra.mxu0 0
    %403 = vmatprep.subr.bf16.mxu0 0
    %404 = vmatpush1.bf16.msra.mxu0 0
    %405 = vmatprep.subr.bf16.mxu0 0
    %406 = vmatpush1.bf16.msra.mxu0 0
    %407 = vmatprep.subr.bf16.mxu0 0
    %408 = vmatpush1.bf16.msra.mxu0 0
    %409 = vmatprep.subr.bf16.mxu0 0
    %410 = vmatpush1.bf16.msra.mxu0 0
    %411 = vmatprep.mubr.bf16.mxu0 0
    %412 = vmatmul.mubr.bf16.gmra.mrb[0].mxu0 %v327
    %v413 = vpop.f32.mrb[0].mxu0
    %v414 = vadd.f32 0.0, %v413
    %v415 = vpop.f32.mrb[0].mxu0
    %v416 = vpop.f32.mrb[0].mxu0
    %v417 = vadd.f32 0.0, %v416
    %v418 = vpop.f32.mrb[0].mxu0
    %419 = vmatprep.mubr.bf16.mxu0 0
    %420 = vmatmul.mubr.bf16.gmra.mrb[0].mxu0 %v328
    %v421 = vpop.f32.mrb[0].mxu0
    %v422 = vadd.f32 0.0, %v421
    %v423 = vpop.f32.mrb[0].mxu0
    %v424 = vpop.f32.mrb[0].mxu0
    %v425 = vadd.f32 0.0, %v424
    %v426 = vpop.f32.mrb[0].mxu0
    %427 = vmatprep.mubr.bf16.mxu0 0
    %428 = vmatmul.mubr.bf16.gmra.mrb[0].mxu0 %v329
    %v429 = vpop.f32.mrb[0].mxu0
    %v430 = vadd.f32 0.0, %v429
    %v431 = vpop.f32.mrb[0].mxu0
    %v432 = vpop.f32.mrb[0].mxu0
    %v433 = vadd.f32 0.0, %v432
    %v434 = vpop.f32.mrb[0].mxu0
    %435 = vmatprep.mubr.bf16.mxu0 0
    %436 = vmatmul.mubr.bf16.gmra.mrb[0].mxu0 %v330
    %v437 = vpop.f32.mrb[0].mxu0
    %v438 = vadd.f32 0.0, %v437
    %v439 = vpop.f32.mrb[0].mxu0
    %v440 = vpop.f32.mrb[0].mxu0
    %v441 = vadd.f32 0.0, %v440
    %v442 = vpop.f32.mrb[0].mxu0
    %443 = vdwg.mxu0
    %v445 = vlaneseq
    %v446 = vshrl.u32 %v445, 7
    %v447 = vsub.s32 0, %v446
    %v448 = vrot.slane %v79, %v447
    %v450 = vadd.f32 %v414, %v448
    %v451 = vadd.f32 %v417, %v448
    %v452 = vadd.f32 %v422, %v448
    %v453 = vadd.f32 %v425, %v448
    %v454 = vadd.f32 %v430, %v448
    %v455 = vadd.f32 %v433, %v448
    %v456 = vadd.f32 %v438, %v448
    %v457 = vadd.f32 %v441, %v448
    %vm458 = vcmask 64512
    %459 = vst.msk [vmem:[%s7] sm:$0xff] %vm458, %v450
    %460 = vst.msk [vmem:[%s7 + $0x8] sm:$0xff] %vm458, %v451
    %461 = vst.msk [vmem:[%s7 + $0x10] sm:$0xff] %vm458, %v452
    %462 = vst.msk [vmem:[%s7 + $0x18] sm:$0xff] %vm458, %v453
    %463 = vst.msk [vmem:[%s7 + $0x20] sm:$0xff] %vm458, %v454
    %464 = vst.msk [vmem:[%s7 + $0x28] sm:$0xff] %vm458, %v455
    %465 = vst.msk [vmem:[%s7 + $0x30] sm:$0xff] %vm458, %v456
    %466 = vst.msk [vmem:[%s7 + $0x38] sm:$0xff] %vm458, %v457
    // Predicated region
    $region34: #{tpu_custom_call.1} parent=1 // pred_check
      _
    $region35: #{tpu_custom_call.1} parent=1 // pred_check_branch
      %468 = sbr.rel (0) target = $region37
    $region36: #{tpu_custom_call.1} parent=1 // pred_region
      _
    $region37: #{tpu_custom_call.1} parent=1 // pred_fallthru
      _
    // Predicated region
    $region38: #{tpu_custom_call.1} parent=1 // pred_check
      _
    $region39: #{tpu_custom_call.1} parent=1 // pred_check_branch
      %470 = sbr.rel (0) target = $region41
    $region40: #{tpu_custom_call.1} parent=1 // pred_region
      _
    $region41: #{tpu_custom_call.1} parent=1 // pred_fallthru
      _
    %471 = vsyncpa [#allocation3], 1

</llo_original>
